<compile_context>
chip_gen: v6e
topology: v6e:2x2x1
jax: 0.10.0
libtpu: 0.0.40
codegen_flags: <defaults>
</compile_context>

<pallas_src>
import functools

import jax
import jax.numpy as jnp
from jax.experimental import pallas as pl
from jax.experimental.pallas import tpu as pltpu


_FAST_PATH_BYTES = 4 * 1024 * 1024      # single-pass VMEM-resident below this
_BLOCK_TARGET_BYTES = 4 * 1024 * 1024   # per-block target for the tiled path
_VMEM_LIMIT_BYTES = 32 * 1024 * 1024    # safe on v5e/v6e (128 MiB) and v7x (64 MiB)
_STATS_SPLIT = 2                        # megacore split of the stats reduction


def _round_up(x, m):
    return ((x + m - 1) // m) * m


# ----------------------------------------------------------------------------
# Fast path: whole (folded) feature matrix resident in VMEM, single pass.
#   refs = (x, gamma, beta[, fold], out)
#   x:            (Nf, Cf) folded, zero-padded features
#   gamma, beta:  (1, Cf)  affine params tiled into the folded lane layout
#   fold:         (Cf, Cf) 0/1 matrix with fold[a, b] = (a % C == b % C);
#                 a single tiny MXU matmul combines the k fold groups per
#                 channel while staying in the folded lane layout.
# ----------------------------------------------------------------------------
def _bn_fused_kernel(*refs, inv_n, eps, folded):
    if folded:
        x_ref, gamma_ref, beta_ref, fold_ref, o_ref = refs
    else:
        x_ref, gamma_ref, beta_ref, o_ref = refs

    x = x_ref[...].astype(jnp.float32)

    # Per-folded-lane partial sums (single reduce over the resident block).
    s = jnp.sum(x, axis=0, keepdims=True)        # (1, Cf)
    q = jnp.sum(x * x, axis=0, keepdims=True)    # (1, Cf)
    if folded:
        s = jnp.dot(s, fold_ref[...], preferred_element_type=jnp.float32)
        q = jnp.dot(q, fold_ref[...], preferred_element_type=jnp.float32)

    # Biased variance via E[x^2] - E[x]^2 (f32 accumulation).
    mean = s * inv_n
    var = q * inv_n - mean * mean
    invstd = jax.lax.rsqrt(var + eps)

    # Pre-fused affine: y = x * scale + bias  (2 VPU ops / element).
    scale = invstd * gamma_ref[...]
    bias = beta_ref[...] - mean * scale
    o_ref[...] = (x * scale + bias).astype(o_ref.dtype)


# ----------------------------------------------------------------------------
# Two-pass path, pass 1: per-(folded-)channel sum / sum-of-squares.
# Grid = (_STATS_SPLIT, steps): leading axis is "parallel" (both TensorCores
# on v7x), trailing axis is the sequential reduction with a VMEM accumulator.
# The final partial sums are written broadcast over an (8, Cf) block so the
# output BlockSpec stays (8, 128)-aligned.
# ----------------------------------------------------------------------------
def _bn_stats_kernel(x_ref, sum_ref, sumsq_ref, acc_s, acc_q):
    i = pl.program_id(1)

    @pl.when(i == 0)
    def _():
        acc_s[...] = jnp.zeros_like(acc_s)
        acc_q[...] = jnp.zeros_like(acc_q)

    # At multi-MiB tiles this axis-0 reduce lowers to mostly vreg-wise VPU
    # adds with a single small cross-sublane collapse per step.
    x = x_ref[...].astype(jnp.float32)
    acc_s[...] += jnp.sum(x, axis=0, keepdims=True)
    acc_q[...] += jnp.sum(x * x, axis=0, keepdims=True)

    @pl.when(i == pl.num_programs(1) - 1)
    def _():
        sum_ref[...] = jnp.broadcast_to(acc_s[...], sum_ref.shape)
        sumsq_ref[...] = jnp.broadcast_to(acc_q[...], sumsq_ref.shape)


# ----------------------------------------------------------------------------
# Two-pass path, pass 2: y = x * scale + bias (affine already folded in).
# ----------------------------------------------------------------------------
def _bn_apply_kernel(x_ref, scale_ref, bias_ref, o_ref):
    x = x_ref[...].astype(jnp.float32)
    o_ref[...] = (x * scale_ref[...] + bias_ref[...]).astype(o_ref.dtype)


def minkowski_sync_batchnorm(feats, gamma, beta, *, eps=1e-5,
                             fast_path_bytes=_FAST_PATH_BYTES,
                             block_target_bytes=_BLOCK_TARGET_BYTES):
    """Training-mode (Sync)BatchNorm forward over sparse-tensor features.

    feats: (N, C) feature matrix (input.F); gamma, beta: (C,) affine params.
    """
    N, C = feats.shape
    orig_dtype = feats.dtype

    # ---- lane folding: make the lane dim a multiple of 128 when C < 128 ----
    if C < 128 and 128 % C == 0:
        k = 128 // C
    else:
        k = 1
    Cf = k * C
    folded = k > 1

    gamma_f = jnp.tile(gamma.astype(jnp.float32).reshape(1, C), (1, k))  # (1, Cf)
    beta_f = jnp.tile(beta.astype(jnp.float32).reshape(1, C), (1, k))    # (1, Cf)

    # TODO(synk): running_mean/running_var momentum update, num_batches_tracked
    # and the cross-device (process_group) all-reduce of (sum, sumsq, count)
    # that SyncBatchNorm performs are not reproduced here (single-device,
    # training-mode normalization only).

    data_bytes = N * C * 4

    if data_bytes <= fast_path_bytes:
        # ---------------- single-pass, VMEM-resident path ----------------
        N_pad = _round_up(N, 8 * k)
        x = feats if N_pad == N else jnp.pad(feats, ((0, N_pad - N), (0, 0)))
        Nf = N_pad // k
        xf = x.reshape(Nf, Cf)

        in_specs = [
            pl.BlockSpec((Nf, Cf), lambda i: (0, 0)),
            pl.BlockSpec((1, Cf), lambda i: (0, 0)),
            pl.BlockSpec((1, Cf), lambda i: (0, 0)),
        ]
        args = [xf, gamma_f, beta_f]
        if folded:
            lane_chan = jnp.arange(Cf, dtype=jnp.int32) % C
            fold_mat = (lane_chan[:, None] == lane_chan[None, :]).astype(jnp.float32)
            in_specs.append(pl.BlockSpec((Cf, Cf), lambda i: (0, 0)))
            args.append(fold_mat)

        kernel = functools.partial(
            _bn_fused_kernel, inv_n=1.0 / N, eps=float(eps), folded=folded)

        out_f = pl.pallas_call(
            kernel,
            out_shape=jax.ShapeDtypeStruct((Nf, Cf), orig_dtype),
            grid_spec=pltpu.PrefetchScalarGridSpec(
                num_scalar_prefetch=0,
                grid=(1,),
                in_specs=in_specs,
                out_specs=pl.BlockSpec((Nf, Cf), lambda i: (0, 0)),
            ),
            compiler_params=pltpu.CompilerParams(
                dimension_semantics=("arbitrary",),
                vmem_limit_bytes=_VMEM_LIMIT_BYTES,
            ),
            cost_estimate=pl.CostEstimate(
                flops=6 * N_pad * C,
                transcendentals=Cf,
                bytes_accessed=2 * N_pad * C * 4,
            ),
        )(*args)
        return out_f.reshape(N_pad, C)[:N]

    # ---------------- two-pass tiled path (large N * C) ----------------
    # Row tile sized from a per-block VMEM budget; total live VMEM stays
    # well under the 32 MiB scoped limit (and under half of v7x's 64 MiB).
    rows_per_block = max(8, (block_target_bytes // (Cf * 4)) // 8 * 8)
    Nf_min = _round_up(N, k) // k
    tile_n = min(rows_per_block,
                 _round_up((Nf_min + _STATS_SPLIT - 1) // _STATS_SPLIT, 8))
    N_pad = _round_up(N, k * tile_n * _STATS_SPLIT)
    x = feats if N_pad == N else jnp.pad(feats, ((0, N_pad - N), (0, 0)))
    Nf = N_pad // k
    xf = x.reshape(Nf, Cf)
    steps = Nf // (tile_n * _STATS_SPLIT)

    # ---- pass 1: per-(folded-)channel sum / sum-of-squares ----
    sum_p, sq_p = pl.pallas_call(
        _bn_stats_kernel,
        out_shape=(
            jax.ShapeDtypeStruct((_STATS_SPLIT * 8, Cf), jnp.float32),
            jax.ShapeDtypeStruct((_STATS_SPLIT * 8, Cf), jnp.float32),
        ),
        grid_spec=pltpu.PrefetchScalarGridSpec(
            num_scalar_prefetch=0,
            grid=(_STATS_SPLIT, steps),
            in_specs=[
                pl.BlockSpec((tile_n, Cf), lambda p, i: (p * steps + i, 0)),
            ],
            out_specs=(
                pl.BlockSpec((8, Cf), lambda p, i: (p, 0)),
                pl.BlockSpec((8, Cf), lambda p, i: (p, 0)),
            ),
            scratch_shapes=[
                pltpu.VMEM((1, Cf), jnp.float32),
                pltpu.VMEM((1, Cf), jnp.float32),
            ],
        ),
        compiler_params=pltpu.CompilerParams(
            dimension_semantics=("parallel", "arbitrary"),
            vmem_limit_bytes=_VMEM_LIMIT_BYTES,
        ),
        cost_estimate=pl.CostEstimate(
            flops=3 * N_pad * C,
            transcendentals=0,
            bytes_accessed=N_pad * C * 4,
        ),
    )(xf)

    # ---- tiny scalar glue: combine partials, biased var, fused scale/bias ----
    # (E[x^2] - E[x]^2 in f32; adequate for typical activation scales.)
    s_c = sum_p.reshape(_STATS_SPLIT, 8, Cf)[:, 0, :].sum(axis=0)
    q_c = sq_p.reshape(_STATS_SPLIT, 8, Cf)[:, 0, :].sum(axis=0)
    s_c = s_c.reshape(k, C).sum(axis=0)                      # (C,)
    q_c = q_c.reshape(k, C).sum(axis=0)                      # (C,)
    mean = s_c / N
    var = q_c / N - mean * mean
    invstd = jax.lax.rsqrt(var + eps)
    scale_c = invstd * gamma.astype(jnp.float32)
    bias_c = beta.astype(jnp.float32) - mean * scale_c
    scale_f = jnp.tile(scale_c, (k,)).reshape(1, Cf)
    bias_f = jnp.tile(bias_c, (k,)).reshape(1, Cf)

    # ---- pass 2: normalize + affine (y = x * scale + bias) ----
    per_c_spec = pl.BlockSpec((1, Cf), lambda i: (0, 0))
    out_f = pl.pallas_call(
        _bn_apply_kernel,
        out_shape=jax.ShapeDtypeStruct((Nf, Cf), orig_dtype),
        grid_spec=pltpu.PrefetchScalarGridSpec(
            num_scalar_prefetch=0,
            grid=(Nf // tile_n,),
            in_specs=[
                pl.BlockSpec((tile_n, Cf), lambda i: (i, 0)),
                per_c_spec,   # scale
                per_c_spec,   # bias
            ],
            out_specs=pl.BlockSpec((tile_n, Cf), lambda i: (i, 0)),
        ),
        compiler_params=pltpu.CompilerParams(
            dimension_semantics=("parallel",),
            vmem_limit_bytes=_VMEM_LIMIT_BYTES,
        ),
        cost_estimate=pl.CostEstimate(
            flops=2 * N_pad * C,
            transcendentals=0,
            bytes_accessed=2 * N_pad * C * 4,
        ),
    )(xf, scale_f, bias_f)
    return out_f.reshape(N_pad, C)[:N]


if __name__ == "__main__":
    key = jax.random.PRNGKey(0)
    eps = 1e-5

    def reference(f, g, b):
        m = f.mean(axis=0, keepdims=True)
        v = f.var(axis=0, keepdims=True)  # biased, as torch BN uses to normalize
        return (f - m) / jnp.sqrt(v + eps) * g + b

    # Sparse tensor with N=256 non-zero points, C=32 features (input.F).
    N, C = 256, 32
    feats = jax.random.normal(key, (N, C), dtype=jnp.float32) * 2.0 + 0.5
    gamma = 1.0 + 0.01 * jnp.arange(C, dtype=jnp.float32)
    beta = 0.01 * jnp.arange(C, dtype=jnp.float32)

    out = minkowski_sync_batchnorm(feats, gamma, beta, eps=eps)
    out = jax.block_until_ready(out)
    ref = reference(feats, gamma, beta)
    assert jnp.allclose(out, ref, atol=1e-4, rtol=1e-4), "fast-path mismatch"

    # Also exercise the tiled two-pass path at a small shape (forced via the
    # size knobs), including a ragged N that is not a tile multiple.
    N2, C2 = 4000, 32
    feats2 = jax.random.normal(jax.random.PRNGKey(1), (N2, C2), jnp.float32) * 1.5 - 0.3
    gamma2 = 1.0 - 0.005 * jnp.arange(C2, dtype=jnp.float32)
    beta2 = 0.02 * jnp.arange(C2, dtype=jnp.float32)
    out2 = minkowski_sync_batchnorm(
        feats2, gamma2, beta2, eps=eps,
        fast_path_bytes=0, block_target_bytes=64 * 1024)
    out2 = jax.block_until_ready(out2)
    ref2 = reference(feats2, gamma2, beta2)
    assert jnp.allclose(out2, ref2, atol=1e-4, rtol=1e-4), "tiled-path mismatch"

    print("KERNEL_OK")
</pallas_src>

<mosaic_0001>
module attributes {stable_mosaic.version = 11 : i64} {
  func.func @_bn_fused_kernel(%arg0: i32, %arg1: memref<64x128xf32, #tpu.memory_space<vmem>>, %arg2: memref<1x128xf32, #tpu.memory_space<vmem>>, %arg3: memref<1x128xf32, #tpu.memory_space<vmem>>, %arg4: memref<128x128xf32, #tpu.memory_space<vmem>>, %arg5: memref<64x128xf32, #tpu.memory_space<vmem>>) attributes {dimension_semantics = [#tpu.dimension_semantics<arbitrary>], iteration_bounds = array<i64: 1>, scalar_prefetch = 0 : i64, scratch_operands = 0 : i64, tpu.core_type = #tpu.core_type<tc>, window_params = [{pipeline_mode = #tpu.pipeline_mode<synchronous>, transform_indices = @transform_0, window_bounds = array<i64: 64, 128>}, {pipeline_mode = #tpu.pipeline_mode<synchronous>, transform_indices = @transform_1, window_bounds = array<i64: 1, 128>}, {pipeline_mode = #tpu.pipeline_mode<synchronous>, transform_indices = @transform_2, window_bounds = array<i64: 1, 128>}, {pipeline_mode = #tpu.pipeline_mode<synchronous>, transform_indices = @transform_3, window_bounds = array<i64: 128, 128>}, {pipeline_mode = #tpu.pipeline_mode<synchronous>, transform_indices = @transform_4, window_bounds = array<i64: 64, 128>}]} {
    %c0 = arith.constant 0 : index
    %c0_0 = arith.constant 0 : index
    %0 = vector.load %arg1[%c0, %c0_0] : memref<64x128xf32, #tpu.memory_space<vmem>>, vector<64x128xf32>
    %cst = arith.constant dense<0.000000e+00> : vector<128xf32>
    %1 = vector.multi_reduction <add>, %0, %cst [0] : vector<64x128xf32> to vector<128xf32>
    %2 = vector.shape_cast %1 : vector<128xf32> to vector<1x128xf32>
    %3 = arith.mulf %0, %0 : vector<64x128xf32>
    %cst_1 = arith.constant dense<0.000000e+00> : vector<128xf32>
    %4 = vector.multi_reduction <add>, %3, %cst_1 [0] : vector<64x128xf32> to vector<128xf32>
    %5 = vector.shape_cast %4 : vector<128xf32> to vector<1x128xf32>
    %c0_2 = arith.constant 0 : index
    %c0_3 = arith.constant 0 : index
    %6 = vector.load %arg4[%c0_2, %c0_3] : memref<128x128xf32, #tpu.memory_space<vmem>>, vector<128x128xf32>
    %cst_4 = arith.constant dense<0.000000e+00> : vector<1x128xf32>
    %7 = tpu.matmul %2, %6, %cst_4 {dimension_numbers = #tpu.dot_dimension_numbers<[1], [0], [0], [1], [0, 0, 1, 1], [], []>} : vector<1x128xf32>, vector<128x128xf32>, vector<1x128xf32> -> vector<1x128xf32>
    %c0_5 = arith.constant 0 : index
    %c0_6 = arith.constant 0 : index
    %8 = vector.load %arg4[%c0_5, %c0_6] : memref<128x128xf32, #tpu.memory_space<vmem>>, vector<128x128xf32>
    %cst_7 = arith.constant dense<0.000000e+00> : vector<1x128xf32>
    %9 = tpu.matmul %5, %8, %cst_7 {dimension_numbers = #tpu.dot_dimension_numbers<[1], [0], [0], [1], [0, 0, 1, 1], [], []>} : vector<1x128xf32>, vector<128x128xf32>, vector<1x128xf32> -> vector<1x128xf32>
    %cst_8 = arith.constant 3.906250e-03 : f32
    %10 = vector.broadcast %cst_8 : f32 to vector<1x128xf32>
    %11 = arith.mulf %7, %10 : vector<1x128xf32>
    %cst_9 = arith.constant 3.906250e-03 : f32
    %12 = vector.broadcast %cst_9 : f32 to vector<1x128xf32>
    %13 = arith.mulf %9, %12 : vector<1x128xf32>
    %14 = arith.mulf %11, %11 : vector<1x128xf32>
    %15 = arith.subf %13, %14 : vector<1x128xf32>
    %cst_10 = arith.constant 9.99999974E-6 : f32
    %16 = vector.broadcast %cst_10 : f32 to vector<1x128xf32>
    %17 = arith.addf %15, %16 : vector<1x128xf32>
    %18 = math.rsqrt %17 : vector<1x128xf32>
    %c0_11 = arith.constant 0 : index
    %c0_12 = arith.constant 0 : index
    %19 = vector.load %arg2[%c0_11, %c0_12] : memref<1x128xf32, #tpu.memory_space<vmem>>, vector<1x128xf32>
    %20 = arith.mulf %18, %19 : vector<1x128xf32>
    %c0_13 = arith.constant 0 : index
    %c0_14 = arith.constant 0 : index
    %21 = vector.load %arg3[%c0_13, %c0_14] : memref<1x128xf32, #tpu.memory_space<vmem>>, vector<1x128xf32>
    %22 = arith.mulf %11, %20 : vector<1x128xf32>
    %23 = arith.subf %21, %22 : vector<1x128xf32>
    %24 = vector.broadcast %20 : vector<1x128xf32> to vector<64x128xf32>
    %25 = arith.mulf %0, %24 : vector<64x128xf32>
    %26 = vector.broadcast %23 : vector<1x128xf32> to vector<64x128xf32>
    %27 = arith.addf %25, %26 : vector<64x128xf32>
    %c0_15 = arith.constant 0 : index
    %c0_16 = arith.constant 0 : index
    %28 = vector.load %arg5[%c0_15, %c0_16] : memref<64x128xf32, #tpu.memory_space<vmem>>, vector<64x128xf32>
    tpu.vector_store %arg5[%c0_15, %c0_16], %27 {strides = array<i32>} : memref<64x128xf32, #tpu.memory_space<vmem>>, vector<64x128xf32>,
    return
  }
  func.func @transform_0(%arg0: i32) -> (i32, i32) {
    %c0_i32 = arith.constant 0 : i32
    %c0_i32_0 = arith.constant 0 : i32
    %c0_i32_1 = arith.constant 0 : i32
    return %c0_i32, %c0_i32_0 : i32, i32
  }
  func.func @transform_1(%arg0: i32) -> (i32, i32) {
    %c0_i32 = arith.constant 0 : i32
    %c0_i32_0 = arith.constant 0 : i32
    %c0_i32_1 = arith.constant 0 : i32
    return %c0_i32, %c0_i32_0 : i32, i32
  }
  func.func @transform_2(%arg0: i32) -> (i32, i32) {
    %c0_i32 = arith.constant 0 : i32
    %c0_i32_0 = arith.constant 0 : i32
    %c0_i32_1 = arith.constant 0 : i32
    return %c0_i32, %c0_i32_0 : i32, i32
  }
  func.func @transform_3(%arg0: i32) -> (i32, i32) {
    %c0_i32 = arith.constant 0 : i32
    %c0_i32_0 = arith.constant 0 : i32
    %c0_i32_1 = arith.constant 0 : i32
    return %c0_i32, %c0_i32_0 : i32, i32
  }
  func.func @transform_4(%arg0: i32) -> (i32, i32) {
    %c0_i32 = arith.constant 0 : i32
    %c0_i32_0 = arith.constant 0 : i32
    %c0_i32_1 = arith.constant 0 : i32
    return %c0_i32, %c0_i32_0 : i32, i32
  }
}

</mosaic_0001>

<llo_original>
// kernel: tpu_custom_call.1
$region0: #{tpu_custom_call.1}
  #allocation0 [shape = 'u32[]', space=smem, size = 0x4, offset = 0x4, fixed_abs, tag = 'smem constant byte address 0x4 - core index']
  #allocation1 [shape = 'u32[144,128]{1,0:T(1,128)}', space=vmem, size = 0x12000, scoped, tag = 'internal scratch']
  %s0 = inlined_call_operand.hbm [shape: f32[64,128], index: 0, kind: input, shape index: {}]
  %s1 = inlined_call_operand.vmem [shape: f32[1,128], index: 1, kind: input, shape index: {}]
  %s2 = inlined_call_operand.vmem [shape: f32[1,128], index: 2, kind: input, shape index: {}]
  %s3 = inlined_call_operand.hbm [shape: f32[128,128], index: 3, kind: input, shape index: {}]
  %s4 = inlined_call_operand.hbm [shape: f32[64,128], index: 4, kind: output, shape index: {}]
  %s5 = sld [smem:[#allocation0]]
  $region34: #{tpu_custom_call.1} parent=0
    _
  %s7 = ssub.s32 1, %s5
  %s8 = scalar_select 0, %s7, %s5
  $region1: #{tpu_custom_call.1} parent=0
    #allocation2 [shape = 'u8[32768]{0}', space=vmem, size = 0x8000, scoped, tag = 'input window, operand 0, single buffered']
    #allocation3 [shape = 's32[1]{0}', space=sflag, size = 0x4, scoped, tag = 'scoped memory for tpu_custom_call.1']
    #allocation4 [shape = 's32[1]{0}', space=sflag, size = 0x4, scoped, tag = 'scoped memory for tpu_custom_call.1']
    #allocation5 [shape = 'u8[65536]{0}', space=vmem, size = 0x10000, scoped, tag = 'input window, operand 3, single buffered']
    #allocation6 [shape = 's32[1]{0}', space=sflag, size = 0x4, scoped, tag = 'scoped memory for tpu_custom_call.1']
    #allocation7 [shape = 'u8[32768]{0}', space=vmem, size = 0x8000, scoped, tag = 'output window, operand 0, single buffered']
    %9 = vsyncpa [#allocation3], 0
    %10 = vsyncpa [#allocation6], 0
    %11 = vsyncpa [#allocation4], 0
    // Predicated region
    $region2: #{tpu_custom_call.1} parent=1 // pred_check
      _
    $region3: #{tpu_custom_call.1} parent=1 // pred_check_branch
      %13 = sbr.rel (0) target = $region5
    $region4: #{tpu_custom_call.1} parent=1 // pred_region
      %s15 = ssub.s32 1024, 1024
      %16 = vsyncadd [#allocation3], %s15
      %s17 = sshll.u32 [#allocation2], 4
      %s18 = int_to_ptr.vmem [resolvable:$true] %s17
      %23 = dma.hbm_to_vmem [thread:$0]  %s0, 1024, %s18, [#allocation3], 128, 128, 8
    $region5: #{tpu_custom_call.1} parent=1 // pred_fallthru
      _
    // Predicated region
    $region6: #{tpu_custom_call.1} parent=1 // pred_check
      _
    $region7: #{tpu_custom_call.1} parent=1 // pred_check_branch
      %25 = sbr.rel (0) target = $region9
    $region8: #{tpu_custom_call.1} parent=1 // pred_region
      _
    $region9: #{tpu_custom_call.1} parent=1 // pred_fallthru
      _
    // Predicated region
    $region10: #{tpu_custom_call.1} parent=1 // pred_check
      _
    $region11: #{tpu_custom_call.1} parent=1 // pred_check_branch
      %27 = sbr.rel (0) target = $region13
    $region12: #{tpu_custom_call.1} parent=1 // pred_region
      _
    $region13: #{tpu_custom_call.1} parent=1 // pred_fallthru
      _
    // Predicated region
    $region14: #{tpu_custom_call.1} parent=1 // pred_check
      _
    $region15: #{tpu_custom_call.1} parent=1 // pred_check_branch
      %29 = sbr.rel (0) target = $region17
    $region16: #{tpu_custom_call.1} parent=1 // pred_region
      %s31 = ssub.s32 2048, 2048
      %32 = vsyncadd [#allocation6], %s31
      %s33 = sshll.u32 [#allocation5], 4
      %s34 = int_to_ptr.vmem [resolvable:$true] %s33
      %39 = dma.hbm_to_vmem [thread:$0]  %s3, 2048, %s34, [#allocation6], 128, 128, 8
    $region17: #{tpu_custom_call.1} parent=1 // pred_fallthru
      _
    // Predicated region
    $region18: #{tpu_custom_call.1} parent=1 // pred_check
      _
    $region19: #{tpu_custom_call.1} parent=1 // pred_check_branch
      %41 = sbr.rel (0) target = $region21
    $region20: #{tpu_custom_call.1} parent=1 // pred_region
      %42 = dma.done [#allocation3], 1024
    $region21: #{tpu_custom_call.1} parent=1 // pred_fallthru
      _
    // Predicated region
    $region22: #{tpu_custom_call.1} parent=1 // pred_check
      _
    $region23: #{tpu_custom_call.1} parent=1 // pred_check_branch
      %44 = sbr.rel (0) target = $region25
    $region24: #{tpu_custom_call.1} parent=1 // pred_region
      %45 = dma.done [#allocation6], 2048
    $region25: #{tpu_custom_call.1} parent=1 // pred_fallthru
      _
    %v46 = vld [vmem:[#allocation2] sm:$0xff]
    %v47 = vld [vmem:[#allocation2 + $0x8] sm:$0xff]
    %v48 = vld [vmem:[#allocation2 + $0x10] sm:$0xff]
    %v49 = vld [vmem:[#allocation2 + $0x18] sm:$0xff]
    %v50 = vld [vmem:[#allocation2 + $0x20] sm:$0xff]
    %v51 = vld [vmem:[#allocation2 + $0x28] sm:$0xff]
    %v52 = vld [vmem:[#allocation2 + $0x30] sm:$0xff]
    %v53 = vld [vmem:[#allocation2 + $0x38] sm:$0xff]
    %v54 = vadd.f32 %v46, %v47
    %v55 = vadd.f32 %v54, %v48
    %v56 = vadd.f32 %v55, %v49
    %v57 = vadd.f32 %v56, %v50
    %v58 = vadd.f32 %v57, %v51
    %v59 = vadd.f32 %v58, %v52
    %v60 = vadd.f32 %v59, %v53
    %v61 = vrot.slane %v60, 4
    %v62 = vadd.f32 %v60, %v61
    %v63 = vrot.slane %v62, 2
    %v64 = vadd.f32 %v62, %v63
    %v65 = vrot.slane %v64, 1
    %v66 = vadd.f32 %v64, %v65
    %v67 = vmul.f32 %v46, %v46
    %v68 = vmul.f32 %v47, %v47
    %v69 = vmul.f32 %v48, %v48
    %v70 = vmul.f32 %v49, %v49
    %v71 = vmul.f32 %v50, %v50
    %v72 = vmul.f32 %v51, %v51
    %v73 = vmul.f32 %v52, %v52
    %v74 = vmul.f32 %v53, %v53
    %v75 = vadd.f32 %v67, %v68
    %v76 = vadd.f32 %v75, %v69
    %v77 = vadd.f32 %v76, %v70
    %v78 = vadd.f32 %v77, %v71
    %v79 = vadd.f32 %v78, %v72
    %v80 = vadd.f32 %v79, %v73
    %v81 = vadd.f32 %v80, %v74
    %v82 = vrot.slane %v81, 4
    %v83 = vadd.f32 %v81, %v82
    %v84 = vrot.slane %v83, 2
    %v85 = vadd.f32 %v83, %v84
    %v86 = vrot.slane %v85, 1
    %v87 = vadd.f32 %v85, %v86
    %v88 = vld [vmem:[#allocation5] sm:$0xff]
    %v89 = vld [vmem:[#allocation5 + $0x8] sm:$0xff]
    %v90 = vld [vmem:[#allocation5 + $0x10] sm:$0xff]
    %v91 = vld [vmem:[#allocation5 + $0x18] sm:$0xff]
    %v92 = vld [vmem:[#allocation5 + $0x20] sm:$0xff]
    %v93 = vld [vmem:[#allocation5 + $0x28] sm:$0xff]
    %v94 = vld [vmem:[#allocation5 + $0x30] sm:$0xff]
    %v95 = vld [vmem:[#allocation5 + $0x38] sm:$0xff]
    %v96 = vld [vmem:[#allocation5 + $0x40] sm:$0xff]
    %v97 = vld [vmem:[#allocation5 + $0x48] sm:$0xff]
    %v98 = vld [vmem:[#allocation5 + $0x50] sm:$0xff]
    %v99 = vld [vmem:[#allocation5 + $0x58] sm:$0xff]
    %v100 = vld [vmem:[#allocation5 + $0x60] sm:$0xff]
    %v101 = vld [vmem:[#allocation5 + $0x68] sm:$0xff]
    %v102 = vld [vmem:[#allocation5 + $0x70] sm:$0xff]
    %v103 = vld [vmem:[#allocation5 + $0x78] sm:$0xff]
    %104 = vmatprep.subr.mxu0 0.0
    %105 = vmatpush1.msra.mxu0 %v103
    %106 = vmatprep.subr.mxu0 0.0
    %107 = vmatpush1.msra.mxu0 %v102
    %108 = vmatprep.subr.mxu0 0.0
    %109 = vmatpush1.msra.mxu0 %v101
    %110 = vmatprep.subr.mxu0 0.0
    %111 = vmatpush1.msra.mxu0 %v100
    %112 = vmatprep.subr.mxu0 0.0
    %113 = vmatpush1.msra.mxu0 %v99
    %114 = vmatprep.subr.mxu0 0.0
    %115 = vmatpush1.msra.mxu0 %v98
    %116 = vmatprep.subr.mxu0 0.0
    %117 = vmatpush1.msra.mxu0 %v97
    %118 = vmatprep.subr.mxu0 0.0
    %119 = vmatpush1.msra.mxu0 %v96
    %120 = vmatprep.subr.mxu0 0.0
    %121 = vmatpush1.msra.mxu0 %v95
    %122 = vmatprep.subr.mxu0 0.0
    %123 = vmatpush1.msra.mxu0 %v94
    %124 = vmatprep.subr.mxu0 0.0
    %125 = vmatpush1.msra.mxu0 %v93
    %126 = vmatprep.subr.mxu0 0.0
    %127 = vmatpush1.msra.mxu0 %v92
    %128 = vmatprep.subr.mxu0 0.0
    %129 = vmatpush1.msra.mxu0 %v91
    %130 = vmatprep.subr.mxu0 0.0
    %131 = vmatpush1.msra.mxu0 %v90
    %132 = vmatprep.subr.mxu0 0.0
    %133 = vmatpush1.msra.mxu0 %v89
    %134 = vmatprep.subr.mxu0 0.0
    %135 = vmatpush1.msra.mxu0 %v88
    %136 = vmatprep.subr.mxu0 0.0
    %137 = vmatpush2.msra.mxu0 0.0
    %138 = vmatprep.subr.mxu0 0.0
    %139 = vmatpush2.msra.mxu0 0.0
    %140 = vmatprep.subr.mxu0 0.0
    %141 = vmatpush2.msra.mxu0 0.0
    %142 = vmatprep.subr.mxu0 0.0
    %143 = vmatpush2.msra.mxu0 0.0
    %144 = vmatprep.subr.mxu0 0.0
    %145 = vmatpush2.msra.mxu0 0.0
    %146 = vmatprep.subr.mxu0 0.0
    %147 = vmatpush2.msra.mxu0 0.0
    %148 = vmatprep.subr.mxu0 0.0
    %149 = vmatpush2.msra.mxu0 0.0
    %150 = vmatprep.subr.mxu0 0.0
    %151 = vmatpush2.msra.mxu0 0.0
    %152 = vmatprep.subr.mxu0 0.0
    %153 = vmatpush2.msra.mxu0 0.0
    %154 = vmatprep.subr.mxu0 0.0
    %155 = vmatpush2.msra.mxu0 0.0
    %156 = vmatprep.subr.mxu0 0.0
    %157 = vmatpush2.msra.mxu0 0.0
    %158 = vmatprep.subr.mxu0 0.0
    %159 = vmatpush2.msra.mxu0 0.0
    %160 = vmatprep.subr.mxu0 0.0
    %161 = vmatpush2.msra.mxu0 0.0
    %162 = vmatprep.subr.mxu0 0.0
    %163 = vmatpush2.msra.mxu0 0.0
    %164 = vmatprep.subr.mxu0 0.0
    %165 = vmatpush2.msra.mxu0 0.0
    %166 = vmatprep.subr.mxu0 0.0
    %167 = vmatpush2.msra.mxu0 0.0
    %168 = vmatprep.mubr.f32.mxu0 0.0
    %169 = vmatmul.mubr.f32.gmra.mxu0 %v66
    %v170 = vpop.f32.mrf.mxu0
    %v171 = vadd.f32 0.0, %v170
    %v172 = vpop.f32.mrf.mxu0
    %173 = vdwg.mxu0
    %174 = vmatprep.subr.mxu0 0.0
    %175 = vmatpush1.msra.mxu0 %v103
    %176 = vmatprep.subr.mxu0 0.0
    %177 = vmatpush1.msra.mxu0 %v102
    %178 = vmatprep.subr.mxu0 0.0
    %179 = vmatpush1.msra.mxu0 %v101
    %180 = vmatprep.subr.mxu0 0.0
    %181 = vmatpush1.msra.mxu0 %v100
    %182 = vmatprep.subr.mxu0 0.0
    %183 = vmatpush1.msra.mxu0 %v99
    %184 = vmatprep.subr.mxu0 0.0
    %185 = vmatpush1.msra.mxu0 %v98
    %186 = vmatprep.subr.mxu0 0.0
    %187 = vmatpush1.msra.mxu0 %v97
    %188 = vmatprep.subr.mxu0 0.0
    %189 = vmatpush1.msra.mxu0 %v96
    %190 = vmatprep.subr.mxu0 0.0
    %191 = vmatpush1.msra.mxu0 %v95
    %192 = vmatprep.subr.mxu0 0.0
    %193 = vmatpush1.msra.mxu0 %v94
    %194 = vmatprep.subr.mxu0 0.0
    %195 = vmatpush1.msra.mxu0 %v93
    %196 = vmatprep.subr.mxu0 0.0
    %197 = vmatpush1.msra.mxu0 %v92
    %198 = vmatprep.subr.mxu0 0.0
    %199 = vmatpush1.msra.mxu0 %v91
    %200 = vmatprep.subr.mxu0 0.0
    %201 = vmatpush1.msra.mxu0 %v90
    %202 = vmatprep.subr.mxu0 0.0
    %203 = vmatpush1.msra.mxu0 %v89
    %204 = vmatprep.subr.mxu0 0.0
    %205 = vmatpush1.msra.mxu0 %v88
    %206 = vmatprep.subr.mxu0 0.0
    %207 = vmatpush2.msra.mxu0 0.0
    %208 = vmatprep.subr.mxu0 0.0
    %209 = vmatpush2.msra.mxu0 0.0
    %210 = vmatprep.subr.mxu0 0.0
    %211 = vmatpush2.msra.mxu0 0.0
    %212 = vmatprep.subr.mxu0 0.0
    %213 = vmatpush2.msra.mxu0 0.0
    %214 = vmatprep.subr.mxu0 0.0
    %215 = vmatpush2.msra.mxu0 0.0
    %216 = vmatprep.subr.mxu0 0.0
    %217 = vmatpush2.msra.mxu0 0.0
    %218 = vmatprep.subr.mxu0 0.0
    %219 = vmatpush2.msra.mxu0 0.0
    %220 = vmatprep.subr.mxu0 0.0
    %221 = vmatpush2.msra.mxu0 0.0
    %222 = vmatprep.subr.mxu0 0.0
    %223 = vmatpush2.msra.mxu0 0.0
    %224 = vmatprep.subr.mxu0 0.0
    %225 = vmatpush2.msra.mxu0 0.0
    %226 = vmatprep.subr.mxu0 0.0
    %227 = vmatpush2.msra.mxu0 0.0
    %228 = vmatprep.subr.mxu0 0.0
    %229 = vmatpush2.msra.mxu0 0.0
    %230 = vmatprep.subr.mxu0 0.0
    %231 = vmatpush2.msra.mxu0 0.0
    %232 = vmatprep.subr.mxu0 0.0
    %233 = vmatpush2.msra.mxu0 0.0
    %234 = vmatprep.subr.mxu0 0.0
    %235 = vmatpush2.msra.mxu0 0.0
    %236 = vmatprep.subr.mxu0 0.0
    %237 = vmatpush2.msra.mxu0 0.0
    %238 = vmatprep.mubr.f32.mxu0 0.0
    %239 = vmatmul.mubr.f32.gmra.mxu0 %v87
    %v240 = vpop.f32.mrf.mxu0
    %v241 = vadd.f32 0.0, %v240
    %v242 = vpop.f32.mrf.mxu0
    %243 = vdwg.mxu0
    %v244 = vmul.f32 %v171, 0.00390625
    %v245 = vmul.f32 %v241, 0.00390625
    %v246 = vmul.f32 %v244, %v244
    %v247 = vsub.f32 %v245, %v246
    %v248 = vadd.f32 %v247, 1e-05
    %v249 = vrsqrt.pop %v248
    %v250 = vld [vmem:[%s1] sm:$0x1]
    %v251 = vmul.f32 %v249, %v250
    %v252 = vld [vmem:[%s2] sm:$0x1]
    %v253 = vmul.f32 %v244, %v251
    %v254 = vsub.f32 %v252, %v253
    %v255 = vlaneseq
    %v256 = vshrl.u32 %v255, 7
    %v257 = vsub.s32 0, %v256
    %v258 = vrot.slane %v251, %v257
    %v259 = vmul.f32 %v46, %v258
    %v260 = vmul.f32 %v47, %v258
    %v261 = vmul.f32 %v48, %v258
    %v262 = vmul.f32 %v49, %v258
    %v263 = vmul.f32 %v50, %v258
    %v264 = vmul.f32 %v51, %v258
    %v265 = vmul.f32 %v52, %v258
    %v266 = vmul.f32 %v53, %v258
    %v268 = vlaneseq
    %v269 = vshrl.u32 %v268, 7
    %v270 = vsub.s32 0, %v269
    %v271 = vrot.slane %v254, %v270
    %v273 = vadd.f32 %v259, %v271
    %v274 = vadd.f32 %v260, %v271
    %v275 = vadd.f32 %v261, %v271
    %v276 = vadd.f32 %v262, %v271
    %v277 = vadd.f32 %v263, %v271
    %v278 = vadd.f32 %v264, %v271
    %v279 = vadd.f32 %v265, %v271
    %v280 = vadd.f32 %v266, %v271
    %281 = vst [vmem:[#allocation7] sm:$0xff] %v273
    %282 = vst [vmem:[#allocation7 + $0x8] sm:$0xff] %v274
    %283 = vst [vmem:[#allocation7 + $0x10] sm:$0xff] %v275
    %284 = vst [vmem:[#allocation7 + $0x18] sm:$0xff] %v276
    %285 = vst [vmem:[#allocation7 + $0x20] sm:$0xff] %v277
    %286 = vst [vmem:[#allocation7 + $0x28] sm:$0xff] %v278
    %287 = vst [vmem:[#allocation7 + $0x30] sm:$0xff] %v279
    %288 = vst [vmem:[#allocation7 + $0x38] sm:$0xff] %v280
    // Predicated region
    $region26: #{tpu_custom_call.1} parent=1 // pred_check
      _
    $region27: #{tpu_custom_call.1} parent=1 // pred_check_branch
      %290 = sbr.rel (0) target = $region29
    $region28: #{tpu_custom_call.1} parent=1 // pred_region
      %s292 = ssub.s32 1024, 1024
      %293 = vsyncadd [#allocation4], %s292
      %s294 = sshll.u32 [#allocation7], 4
      %s295 = int_to_ptr.vmem [resolvable:$true] %s294
      %300 = dma.vmem_to_hbm [thread:$0]  %s295, 1024, %s4, [#allocation4], 128, 128, 8
    $region29: #{tpu_custom_call.1} parent=1 // pred_fallthru
      _
    // Predicated region
    $region30: #{tpu_custom_call.1} parent=1 // pred_check
      _
    $region31: #{tpu_custom_call.1} parent=1 // pred_check_branch
      %302 = sbr.rel (0) target = $region33
    $region32: #{tpu_custom_call.1} parent=1 // pred_region
      %303 = dma.done [#allocation4], 1024
    $region33: #{tpu_custom_call.1} parent=1 // pred_fallthru
      _
    %304 = vsyncpa [#allocation3], 1
    %305 = vsyncpa [#allocation6], 1
    %306 = vsyncpa [#allocation4], 1

</llo_original>
